<compile_context>
chip_gen: v5e
topology: v5e:2x2
jax: 0.10.0
libtpu: 0.0.40
codegen_flags: <defaults>
</compile_context>

<pallas_src>
import jax
import jax.numpy as jnp
from jax.experimental import pallas as pl
from jax.experimental.pallas import tpu as pltpu


def _embedding_bert_kernel(ids_ref,     # SMEM (B, Sp) int32 token ids (scalar prefetch)
                           seg_ref,     # VMEM (TS, 1) int32 segment ids for this tile
                           pos_ref,     # VMEM (TS, D) position rows for this tile
                           segtab_ref,  # VMEM (G, D) full (tiny) segment table
                           tok_hbm,     # HBM  (V, D) token table (memory_space=pl.ANY)
                           out_ref,     # VMEM (TS, D) output block
                           gbuf,        # VMEM (TS, D) gathered token rows (scratch)
                           sem):        # single DMA semaphore
    s = pl.program_id(0)
    b = pl.program_id(1)
    TS, D = gbuf.shape
    G = segtab_ref.shape[0]
    base = s * TS

    # Phase 1: issue one row-gather DMA per token of this sequence tile.
    @pl.loop(0, TS)
    def _issue(r):
        tok_id = ids_ref[b, base + r]
        pltpu.make_async_copy(tok_hbm.at[pl.ds(tok_id, 1)],
                              gbuf.at[pl.ds(r, 1)], sem).start()

    # Phase 2 (overlaps the in-flight gathers): position + segment embedding on the VPU.
    # NOTE: out-of-range segment ids fall back to row 0 (torch would raise).
    seg_ids = seg_ref[...]                                              # (TS, 1) int32
    seg_emb = jnp.broadcast_to(segtab_ref[0, :].astype(jnp.float32), (TS, D))
    for g in range(1, G):
        row_g = jnp.broadcast_to(segtab_ref[g, :].astype(jnp.float32), (TS, D))
        seg_emb = jnp.where(jnp.broadcast_to(seg_ids == g, (TS, D)), row_g, seg_emb)
    pos_seg = pos_ref[...].astype(jnp.float32) + seg_emb

    # Phase 3: wait for all row gathers (same-shape descriptors -> balanced waits).
    @pl.loop(0, TS)
    def _wait(r):
        pltpu.make_async_copy(tok_hbm.at[pl.ds(0, 1)],
                              gbuf.at[pl.ds(r, 1)], sem).wait()

    # Phase 4: single fused write (no store-then-reload accumulation).
    out_ref[...] = (gbuf[...].astype(jnp.float32) + pos_seg).astype(out_ref.dtype)


def _round_up(n, m):
    return -(-n // m) * m


def _choose_seq_tile(s_pad, batch, max_tile):
    """Largest multiple of 8 <= max_tile dividing s_pad; keep >=2 grid steps for v7x."""
    def best_divisor(cap):
        t = max(8, min(s_pad, (cap // 8) * 8))
        while s_pad % t != 0:
            t -= 8
        return t

    t = best_divisor(max_tile)
    if batch * (s_pad // t) < 2 and t > 8:   # keep both v7x TensorCores busy
        t = best_divisor(t // 2)
    return t


def embedding_bert(x, seg, tok_table, pos_table, seg_table, *, max_seq_tile=256):
    """tok_embed(x) + pos_embed(arange(S)) + seg_embed(seg), matching the torch module."""
    B, S = x.shape
    V, D = tok_table.shape
    P = pos_table.shape[0]
    G = seg_table.shape[0]
    assert S <= P, "sequence length must not exceed maxlen of the position table"

    tok_t, pos_t, seg_t = tok_table, pos_table, seg_table

    # Lane-dense embedding dim: pad D to a multiple of 128 (no-op for production D=768).
    Dp = _round_up(D, 128)
    if Dp != D:
        pad_d = ((0, 0), (0, Dp - D))
        tok_t = jnp.pad(tok_t, pad_d)
        pos_t = jnp.pad(pos_t, pad_d)
        seg_t = jnp.pad(seg_t, pad_d)

    # Pad the sequence to a multiple of 8 so sequence tiles satisfy the sublane rule.
    # torch.nn.Embedding raises on out-of-range ids; we clamp so the HBM row gather
    # stays in bounds (silent difference for invalid inputs).
    Sp = _round_up(S, 8)
    x_i = jnp.clip(x.astype(jnp.int32), 0, V - 1)
    seg_i = jnp.clip(seg.astype(jnp.int32), 0, G - 1)
    if Sp != S:
        x_i = jnp.pad(x_i, ((0, 0), (0, Sp - S)))       # padded ids -> row 0, sliced off
        seg_i = jnp.pad(seg_i, ((0, 0), (0, Sp - S)))
    if pos_t.shape[0] < Sp:
        pos_t = jnp.pad(pos_t, ((0, Sp - pos_t.shape[0]), (0, 0)))

    TS = _choose_seq_tile(Sp, B, max_seq_tile)
    n_s = Sp // TS
    seg3 = seg_i[:, :, None]

    # Explicit VMEM budget: double-buffered pipeline blocks + single gather scratch,
    # with 2x headroom.  Never request the whole physical VMEM (64 MiB on v7x).
    blk = TS * Dp * 4
    est = 2 * (blk + blk + TS * 4 + G * Dp * 4) + blk
    vmem_limit = int(min(48 * 1024 * 1024, max(16 * 1024 * 1024, 2 * est)))

    out = pl.pallas_call(
        _embedding_bert_kernel,
        out_shape=jax.ShapeDtypeStruct((B, Sp, Dp), jnp.float32),
        grid_spec=pltpu.PrefetchScalarGridSpec(
            num_scalar_prefetch=1,                       # token ids -> SMEM DMA indices
            grid=(n_s, B),                               # b innermost: pos block stays resident
            in_specs=[
                pl.BlockSpec((None, TS, 1), lambda s, b, ids: (b, s, 0)),   # segment ids
                pl.BlockSpec((TS, Dp), lambda s, b, ids: (s, 0)),           # position rows
                pl.BlockSpec((G, Dp), lambda s, b, ids: (0, 0)),            # segment table
                pl.BlockSpec(memory_space=pl.ANY),                          # token table (HBM)
            ],
            out_specs=pl.BlockSpec((None, TS, Dp), lambda s, b, ids: (b, s, 0)),
            scratch_shapes=[
                pltpu.VMEM((TS, Dp), tok_t.dtype),       # gathered token rows
                pltpu.SemaphoreType.DMA(()),             # one sem; TS balanced start/wait
            ],
        ),
        compiler_params=pltpu.CompilerParams(
            dimension_semantics=("parallel", "parallel"),
            vmem_limit_bytes=vmem_limit,
        ),
    )(x_i, seg3, pos_t, seg_t, tok_t)

    return out[:, :S, :D]


if __name__ == "__main__":
    # Small shapes consistent with the module: vocab_size, d_model, maxlen, n_segments
    B, S = 2, 8
    vocab_size, d_model, maxlen, n_segments = 32, 32, 16, 2

    key = jax.random.PRNGKey(0)
    k_tok, k_pos, k_seg, k_x, k_s = jax.random.split(key, 5)

    # nn.Embedding default init ~ N(0, 1)
    tok_table = jax.random.normal(k_tok, (vocab_size, d_model), dtype=jnp.float32)
    pos_table = jax.random.normal(k_pos, (maxlen, d_model), dtype=jnp.float32)
    seg_table = jax.random.normal(k_seg, (n_segments, d_model), dtype=jnp.float32)

    x = jax.random.randint(k_x, (B, S), 0, vocab_size, dtype=jnp.int32)
    seg = jax.random.randint(k_s, (B, S), 0, n_segments, dtype=jnp.int32)

    out = embedding_bert(x, seg, tok_table, pos_table, seg_table)
    out = jax.block_until_ready(out)

    # Pure-JAX reference check of the forward semantics.
    pos = jnp.arange(S, dtype=jnp.int32)[None, :].repeat(B, axis=0)
    ref = tok_table[x] + pos_table[pos] + seg_table[seg]
    assert out.shape == (B, S, d_model)
    assert jnp.allclose(out, ref, atol=1e-5, rtol=1e-5)

    print("KERNEL_OK")
</pallas_src>

<mosaic_0001>
module attributes {stable_mosaic.version = 11 : i64} {
  func.func @_embedding_bert_kernel(%arg0: i32, %arg1: i32, %arg2: memref<2x8xi32, #tpu.memory_space<smem>>, %arg3: memref<1x8x1xi32, #tpu.memory_space<vmem>>, %arg4: memref<8x128xf32, #tpu.memory_space<vmem>>, %arg5: memref<2x128xf32, #tpu.memory_space<vmem>>, %arg6: memref<32x128xf32, #tpu.memory_space<any>>, %arg7: memref<1x8x128xf32, #tpu.memory_space<vmem>>, %arg8: memref<8x128xf32, #tpu.memory_space<vmem>>, %arg9: memref<!tpu.dma_semaphore, #tpu.memory_space<semaphore_mem>>) attributes {dimension_semantics = [#tpu.dimension_semantics<parallel>, #tpu.dimension_semantics<parallel>], iteration_bounds = array<i64: 1, 2>, scalar_prefetch = 1 : i64, scratch_operands = 2 : i64, tpu.core_type = #tpu.core_type<tc>, window_params = [{transform_indices = @transform_0, window_bounds = array<i64: 1, 8, 1>}, {transform_indices = @transform_1, window_bounds = array<i64: 8, 128>}, {pipeline_mode = #tpu.pipeline_mode<synchronous>, transform_indices = @transform_2, window_bounds = array<i64: 2, 128>}, {}, {transform_indices = @transform_4, window_bounds = array<i64: 1, 8, 128>}]} {
    %c8_i32 = arith.constant 8 : i32
    %0 = arith.muli %arg0, %c8_i32 : i32
    %c0_i32 = arith.constant 0 : i32
    %c8_i32_0 = arith.constant 8 : i32
    %1 = arith.addi %c0_i32, %c8_i32_0 : i32
    %c1_i32 = arith.constant 1 : i32
    scf.for %arg10 = %c0_i32 to %1 step %c1_i32  : i32 {
      %c1_i32_19 = arith.constant 1 : i32
      %25 = arith.muli %arg10, %c1_i32_19 : i32
      %c0_i32_20 = arith.constant 0 : i32
      %26 = arith.addi %c0_i32_20, %25 : i32
      %27 = arith.addi %0, %26 : i32
      %28 = arith.index_cast %arg1 : i32 to index
      %29 = arith.index_cast %27 : i32 to index
      %30 = memref.load %arg2[%28, %29] : memref<2x8xi32, #tpu.memory_space<smem>>
      %c0_i32_21 = arith.constant 0 : i32
      %31 = tpu.memref_slice %arg6[%30, %c0_i32_21] : memref<32x128xf32, #tpu.memory_space<any>> -> memref<1x128xf32, #tpu.memory_space<any>>
      %c0_i32_22 = arith.constant 0 : i32
      %32 = tpu.memref_slice %arg8[%26, %c0_i32_22] : memref<8x128xf32, #tpu.memory_space<vmem>> -> memref<1x128xf32, #tpu.memory_space<vmem>>
      tpu.enqueue_dma source(%31 : memref<1x128xf32, #tpu.memory_space<any>>) target(%32 : memref<1x128xf32, #tpu.memory_space<vmem>>) target_semaphore(%arg9 : memref<!tpu.dma_semaphore, #tpu.memory_space<semaphore_mem>>)
    }
    %c8_i32_1 = arith.constant 8 : i32
    %c0 = arith.constant 0 : index
    %c0_2 = arith.constant 0 : index
    %c0_3 = arith.constant 0 : index
    %2 = vector.load %arg3[%c0, %c0_2, %c0_3] : memref<1x8x1xi32, #tpu.memory_space<vmem>>, vector<1x8x1xi32>
    %3 = vector.shape_cast %2 : vector<1x8x1xi32> to vector<8x1xi32>
    %c0_4 = arith.constant 0 : index
    %c0_5 = arith.constant 0 : index
    %4 = vector.load %arg5[%c0_4, %c0_5] : memref<2x128xf32, #tpu.memory_space<vmem>>, vector<1x128xf32>
    %5 = vector.shape_cast %4 : vector<1x128xf32> to vector<128xf32>
    %6 = vector.shape_cast %5 : vector<128xf32> to vector<1x128xf32>
    %7 = vector.broadcast %6 : vector<1x128xf32> to vector<8x128xf32>
    %c1 = arith.constant 1 : index
    %c0_6 = arith.constant 0 : index
    %8 = vector.load %arg5[%c1, %c0_6] : memref<2x128xf32, #tpu.memory_space<vmem>>, vector<1x128xf32>
    %9 = vector.shape_cast %8 : vector<1x128xf32> to vector<128xf32>
    %10 = vector.shape_cast %9 : vector<128xf32> to vector<1x128xf32>
    %11 = vector.broadcast %10 : vector<1x128xf32> to vector<8x128xf32>
    %c1_i32_7 = arith.constant 1 : i32
    %12 = vector.broadcast %c1_i32_7 : i32 to vector<8x1xi32>
    %13 = arith.cmpi eq, %3, %12 : vector<8x1xi32>
    %14 = vector.shape_cast %13 : vector<8x1xi1> to vector<8x1xi1>
    %15 = vector.broadcast %14 : vector<8x1xi1> to vector<8x128xi1>
    %16 = arith.select %15, %11, %7 : vector<8x128xi1>, vector<8x128xf32>
    %c0_8 = arith.constant 0 : index
    %c0_9 = arith.constant 0 : index
    %17 = vector.load %arg4[%c0_8, %c0_9] : memref<8x128xf32, #tpu.memory_space<vmem>>, vector<8x128xf32>
    %18 = arith.addf %17, %16 : vector<8x128xf32>
    %c0_i32_10 = arith.constant 0 : i32
    %c8_i32_11 = arith.constant 8 : i32
    %19 = arith.addi %c0_i32_10, %c8_i32_11 : i32
    %c1_i32_12 = arith.constant 1 : i32
    scf.for %arg10 = %c0_i32_10 to %19 step %c1_i32_12  : i32 {
      %c1_i32_19 = arith.constant 1 : i32
      %25 = arith.muli %arg10, %c1_i32_19 : i32
      %c0_i32_20 = arith.constant 0 : i32
      %26 = arith.addi %c0_i32_20, %25 : i32
      %c0_i32_21 = arith.constant 0 : i32
      %c0_i32_22 = arith.constant 0 : i32
      %27 = tpu.memref_slice %arg6[%c0_i32_21, %c0_i32_22] : memref<32x128xf32, #tpu.memory_space<any>> -> memref<1x128xf32, #tpu.memory_space<any>>
      %c0_i32_23 = arith.constant 0 : i32
      %28 = tpu.memref_slice %arg8[%26, %c0_i32_23] : memref<8x128xf32, #tpu.memory_space<vmem>> -> memref<1x128xf32, #tpu.memory_space<vmem>>
      tpu.wait_dma2 semaphore(%arg9 : memref<!tpu.dma_semaphore, #tpu.memory_space<semaphore_mem>>) src(%27 : memref<1x128xf32, #tpu.memory_space<any>>) dst(%28 : memref<1x128xf32, #tpu.memory_space<vmem>>)
    }
    %c8_i32_13 = arith.constant 8 : i32
    %c0_14 = arith.constant 0 : index
    %c0_15 = arith.constant 0 : index
    %20 = vector.load %arg8[%c0_14, %c0_15] : memref<8x128xf32, #tpu.memory_space<vmem>>, vector<8x128xf32>
    %21 = arith.addf %20, %18 : vector<8x128xf32>
    %c0_16 = arith.constant 0 : index
    %c0_17 = arith.constant 0 : index
    %c0_18 = arith.constant 0 : index
    %22 = vector.load %arg7[%c0_16, %c0_17, %c0_18] : memref<1x8x128xf32, #tpu.memory_space<vmem>>, vector<1x8x128xf32>
    %23 = vector.shape_cast %22 : vector<1x8x128xf32> to vector<8x128xf32>
    %24 = vector.shape_cast %21 : vector<8x128xf32> to vector<1x8x128xf32>
    tpu.vector_store %arg7[%c0_16, %c0_17, %c0_18], %24 {strides = array<i32>} : memref<1x8x128xf32, #tpu.memory_space<vmem>>, vector<1x8x128xf32>,
    return
  }
  func.func @transform_0(%arg0: i32, %arg1: i32, %arg2: memref<2x8xi32, #tpu.memory_space<smem>>) -> (i32, i32, i32) {
    %c0_i32 = arith.constant 0 : i32
    %c0_i32_0 = arith.constant 0 : i32
    return %arg1, %arg0, %c0_i32 : i32, i32, i32
  }
  func.func @transform_1(%arg0: i32, %arg1: i32, %arg2: memref<2x8xi32, #tpu.memory_space<smem>>) -> (i32, i32) {
    %c0_i32 = arith.constant 0 : i32
    %c0_i32_0 = arith.constant 0 : i32
    return %arg0, %c0_i32 : i32, i32
  }
  func.func @transform_2(%arg0: i32, %arg1: i32, %arg2: memref<2x8xi32, #tpu.memory_space<smem>>) -> (i32, i32) {
    %c0_i32 = arith.constant 0 : i32
    %c0_i32_0 = arith.constant 0 : i32
    %c0_i32_1 = arith.constant 0 : i32
    return %c0_i32, %c0_i32_0 : i32, i32
  }
  func.func @transform_4(%arg0: i32, %arg1: i32, %arg2: memref<2x8xi32, #tpu.memory_space<smem>>) -> (i32, i32, i32) {
    %c0_i32 = arith.constant 0 : i32
    %c0_i32_0 = arith.constant 0 : i32
    return %arg1, %arg0, %c0_i32 : i32, i32, i32
  }
}

</mosaic_0001>

<llo_original>
// kernel: tpu_custom_call.1
$region0: #{tpu_custom_call.1}
  #allocation0 [shape = 'u32[]', space=smem, size = 0x4, offset = 0x4, fixed_abs, tag = 'smem constant byte address 0x4 - core index']
  #allocation1 [shape = 'u32[72,128]{1,0:T(1,128)}', space=vmem, size = 0x9000, scoped, tag = 'internal scratch']
  #allocation2 [shape = 'f32[8,128]{1,0:T(8,128)}', space=vmem, size = 0x1000, scoped, tag = 'scratch operand']
  #allocation3 [shape = 's32[1]{0}', space=sflag, size = 0x4, scoped, tag = 'scratch operand']
  #allocation4 [shape = 's32[1]{0}', space=sflag, size = 0x4, scoped, tag = 'scoped memory for tpu_custom_call.1']
  #allocation5 [shape = 'u8[1024]{0}', space=smem, size = 0x400, scoped, tag = 'prefetched SMEM operand 0']
  #allocation8 [shape = 's32[]', space=sflag, size = 0x4, offset = 0, fixed_abs, tag = 'sflag constant byte address 0x0 - dummy sync flag']
  #allocation9 [shape = 's32[]', space=sflag, size = 0x4, offset = 0, fixed_abs, tag = 'sflag constant byte address 0x0 - dummy sync flag']
  #allocation10 [shape = 'u32[]', space=smem, size = 0x4, offset = 0x44, fixed_abs, tag = 'smem constant byte address 0x44 - assertion arg 0']
  #allocation11 [shape = 'u32[]', space=smem, size = 0x4, offset = 0x48, fixed_abs, tag = 'smem constant byte address 0x48 - assertion arg 1']
  %s0 = inlined_call_operand.vmem [shape: s32[2,8], index: 0, kind: input, shape index: {}]
  %s1 = inlined_call_operand.vmem [shape: s32[2,8,1], index: 1, kind: input, shape index: {}]
  %s2 = inlined_call_operand.vmem [shape: f32[16,128], index: 2, kind: input, shape index: {}]
  %s3 = inlined_call_operand.vmem [shape: f32[2,128], index: 3, kind: input, shape index: {}]
  %s4 = inlined_call_operand.hbm [shape: f32[32,128], index: 4, kind: input, shape index: {}]
  %s5 = inlined_call_operand.hbm [shape: f32[2,8,128], index: 5, kind: output, shape index: {}]
  %s6 = sld [smem:[#allocation0]]
  $region63: #{tpu_custom_call.1} parent=0
    _
  %s8 = ssub.s32 1, %s6
  %s9 = scalar_select 0, %s8, %s6
  %s11 = sshll.u32 %s0, 4
  %s12 = int_to_ptr.vmem [resolvable:$true] %s11
  %14 = dma.vmem_to_smem %s12, 32, [#allocation5], [#allocation4]
  %16 = dma.done [#allocation4], 32
  %17 = sfence
  $region1: #{tpu_custom_call.1} parent=0
    #allocation6 [shape = 'u8[8192]{0}', space=vmem, size = 0x2000, scoped, tag = 'output window, operand 0']
    #allocation7 [shape = 's32[2]{0}', space=sflag, size = 0x8, scoped, tag = 'scoped memory for tpu_custom_call.1']
    %18 = vsyncpa [#allocation7], 0
    %s19 = scalar_lea.sflag [#allocation7], 1
    %20 = vsyncpa %s19, 0
    loop: start=0, step=1, limit=4
    $region2: #{tpu_custom_call.1} parent=1 // loop_pre_header
      _
    $region3: #{tpu_custom_call.1} parent=1 // loop_header
      %s22 = sphi 0, %s26
      %p23 = scmp.ge.s32.totalorder %s22, 4
      %s29 = sphi 0, %s41
      %s30 = sphi 0, %s37
      %s31 = sphi 0, %s29
      %s32 = sphi 0, %s30
      %s33 = sphi 0, %s31
      %s34 = sphi 0, %s32
      %s46 = sphi 0, %s48
      %s49 = sphi 0, %s46
      %s50 = sphi 0, %s49
      %s66 = sphi 0, %s50
      %s72 = sphi 0, %s74
      %s75 = sphi 0, %s72
      %s76 = sphi 0, %s75
      %s92 = sphi 0, %s76
      %s96 = sphi 0, %s96
      %s98 = sphi 0, %s96
      %s99 = sphi 0, %s98
      %s113 = sphi 0, %s99
      %s121 = sphi 0, %s123
      %s124 = sphi 0, %s121
      %s125 = sphi 0, %s124
      %s141 = sphi 0, %s125
    $region4: #{tpu_custom_call.1} parent=1 // loop_header_branch
      %25 = sbr.rel (%p23) target = $region8
    $region5: #{tpu_custom_call.1} parent=1 // loop_body
      %s27 = ssub.s32 %s22, 1
      %s28 = ssub.s32 %s22, 2
      %s35 = sadd.s32 1, %s30
      %p36 = scmp.ge.s32.totalorder %s35, 2
      %s37 = scalar_select %p36, 0, %s35
      %s38 = sadd.s32 1, %s29
      %s39 = scalar_select %p36, %s38, %s29
      %p40 = scmp.ge.s32.totalorder %s39, 1
      %s41 = scalar_select %p40, 0, %s39
      %s42 = ssub.s32 %s30, %s37
      %s43 = ssub.s32 %s29, %s41
      %s44 = sor.u32 %s42, %s43
      %p45 = scmp.eq.s32.totalorder %s44, 0
      %s47 = sadd.s32 %s46, 1
      %s48 = scalar_select %p45, %s46, %s47
      %p51 = pneg %p45
      %p52 = scmp.eq.s32.totalorder %s22, 1
      %p53 = por %p51, %p52
      %p54 = scmp.ne.s32.totalorder %s46, %s49
      %p55 = scmp.eq.s32.totalorder %s22, 0
      %p56 = por %p54, %p55
      %p57 = scmp.ne.s32.totalorder %s46, %s49
      %p58 = scmp.eq.s32.totalorder %s27, 1
      %p59 = por %p57, %p58
      %p60 = scmp.ne.s32.totalorder %s49, %s50
      %p61 = scmp.eq.s32.totalorder %s27, 0
      %p62 = por %p60, %p61
      %p63 = scmp.ne.s32.totalorder %s49, %s50
      %p64 = scmp.eq.s32.totalorder %s28, 1
      %p65 = por %p63, %p64
      %p67 = scmp.ne.s32.totalorder %s50, %s66
      %p68 = scmp.eq.s32.totalorder %s28, 0
      %p69 = por %p67, %p68
      %s70 = ssub.s32 %s29, %s41
      %p71 = scmp.eq.s32.totalorder %s70, 0
      %s73 = sadd.s32 %s72, 1
      %s74 = scalar_select %p71, %s72, %s73
      %p77 = pneg %p71
      %p78 = scmp.eq.s32.totalorder %s22, 1
      %p79 = por %p77, %p78
      %p80 = scmp.ne.s32.totalorder %s72, %s75
      %p81 = scmp.eq.s32.totalorder %s22, 0
      %p82 = por %p80, %p81
      %p83 = scmp.ne.s32.totalorder %s72, %s75
      %p84 = scmp.eq.s32.totalorder %s27, 1
      %p85 = por %p83, %p84
      %p86 = scmp.ne.s32.totalorder %s75, %s76
      %p87 = scmp.eq.s32.totalorder %s27, 0
      %p88 = por %p86, %p87
      %p89 = scmp.ne.s32.totalorder %s75, %s76
      %p90 = scmp.eq.s32.totalorder %s28, 1
      %p91 = por %p89, %p90
      %p93 = scmp.ne.s32.totalorder %s76, %s92
      %p94 = scmp.eq.s32.totalorder %s28, 0
      %p95 = por %p93, %p94
      %s97 = sadd.s32 %s96, 1
      %p100 = scmp.eq.s32.totalorder %s22, 1
      %p101 = scmp.ne.s32.totalorder %s96, %s98
      %p102 = scmp.eq.s32.totalorder %s22, 0
      %p103 = por %p101, %p102
      %p104 = scmp.ne.s32.totalorder %s96, %s98
      %p105 = scmp.eq.s32.totalorder %s27, 1
      %p106 = por %p104, %p105
      %p107 = scmp.ne.s32.totalorder %s98, %s99
      %p108 = scmp.eq.s32.totalorder %s27, 0
      %p109 = por %p107, %p108
      %p110 = scmp.ne.s32.totalorder %s98, %s99
      %p111 = scmp.eq.s32.totalorder %s28, 1
      %p112 = por %p110, %p111
      %p114 = scmp.ne.s32.totalorder %s99, %s113
      %p115 = scmp.eq.s32.totalorder %s28, 0
      %p116 = por %p114, %p115
      %s117 = ssub.s32 %s30, %s37
      %s118 = ssub.s32 %s29, %s41
      %s119 = sor.u32 %s117, %s118
      %p120 = scmp.eq.s32.totalorder %s119, 0
      %s122 = sadd.s32 %s121, 1
      %s123 = scalar_select %p120, %s121, %s122
      %p126 = pneg %p120
      %p127 = scmp.eq.s32.totalorder %s22, 1
      %p128 = por %p126, %p127
      %p129 = scmp.ne.s32.totalorder %s121, %s124
      %p130 = scmp.eq.s32.totalorder %s22, 0
      %p131 = por %p129, %p130
      %p132 = scmp.ne.s32.totalorder %s121, %s124
      %p133 = scmp.eq.s32.totalorder %s27, 1
      %p134 = por %p132, %p133
      %p135 = scmp.ne.s32.totalorder %s124, %s125
      %p136 = scmp.eq.s32.totalorder %s27, 0
      %p137 = por %p135, %p136
      %p138 = scmp.ne.s32.totalorder %s124, %s125
      %p139 = scmp.eq.s32.totalorder %s28, 1
      %p140 = por %p138, %p139
      %p142 = scmp.ne.s32.totalorder %s125, %s141
      %p143 = scmp.eq.s32.totalorder %s28, 0
      %p144 = por %p142, %p143
      %p145 = scmp.le.s32.totalorder 1, %s22
      %p146 = scmp.lt.s32.totalorder %s22, 3
      %p147 = pnand %p145, %p146
      %p148 = pneg %p147
      // Predicated region
      $region9: #{tpu_custom_call.1} parent=5 // pred_check
        _
      $region10: #{tpu_custom_call.1} parent=5 // pred_check_branch
        %150 = sbr.rel (%p147) target = $region12
      $region11: #{tpu_custom_call.1} parent=5 // pred_region
        %s151 = ssub.s32 %s22, 1
        // Predicated region
        $region13: #{tpu_custom_call.1} parent=11 // pred_check
          %p152 = pneg %p88
        $region14: #{tpu_custom_call.1} parent=11 // pred_check_branch
          %154 = sbr.rel (%p152) target = $region16
        $region15: #{tpu_custom_call.1} parent=11 // pred_region
          %p155 = scmp.lt.s32.totalorder %s31, 1
          %s156 = scalar_select %p155, %s31, 1
          %s157 = smul.addr %s156, 8
          %s158 = scalar_lea.vmem %s2, %s157
        $region16: #{tpu_custom_call.1} parent=11 // pred_fallthru
          _
        // Predicated region
        $region17: #{tpu_custom_call.1} parent=11 // pred_check
          %p159 = pneg %p109
        $region18: #{tpu_custom_call.1} parent=11 // pred_check_branch
          %161 = sbr.rel (%p159) target = $region20
        $region19: #{tpu_custom_call.1} parent=11 // pred_region
          _
        $region20: #{tpu_custom_call.1} parent=11 // pred_fallthru
          _
      $region12: #{tpu_custom_call.1} parent=5 // pred_fallthru
        _
      %p162 = scmp.lt.s32.totalorder %s22, 2
      // Predicated region
      $region21: #{tpu_custom_call.1} parent=5 // pred_check
        %p163 = pneg %p162
      $region22: #{tpu_custom_call.1} parent=5 // pred_check_branch
        %165 = sbr.rel (%p163) target = $region24
      $region23: #{tpu_custom_call.1} parent=5 // pred_region
        // Predicated region
        $region25: #{tpu_custom_call.1} parent=23 // pred_check
          %p166 = pneg %p56
        $region26: #{tpu_custom_call.1} parent=23 // pred_check_branch
          %168 = sbr.rel (%p166) target = $region28
        $region27: #{tpu_custom_call.1} parent=23 // pred_region
          %p169 = scmp.lt.s32.totalorder %s30, 1
          %s170 = scalar_select %p169, %s30, 1
          %p171 = scmp.lt.s32.totalorder %s29, 0
          %s172 = scalar_select %p171, %s29, 0
          %s173 = sadd.s32 %s172, %s170
          %s174 = smul.addr %s173, 8
          %s175 = scalar_lea.vmem %s1, %s174
        $region28: #{tpu_custom_call.1} parent=23 // pred_fallthru
          _
      $region24: #{tpu_custom_call.1} parent=5 // pred_fallthru
        _
      %p176 = scmp.le.s32.totalorder 1, %s22
      %p177 = scmp.lt.s32.totalorder %s22, 3
      %p178 = pnand %p176, %p177
      %p179 = pneg %p178
      // Predicated region
      $region29: #{tpu_custom_call.1} parent=5 // pred_check
        _
      $region30: #{tpu_custom_call.1} parent=5 // pred_check_branch
        %181 = sbr.rel (%p178) target = $region32
      $region31: #{tpu_custom_call.1} parent=5 // pred_region
        %s182 = ssub.s32 %s22, 1
        %p183 = scmp.lt.s32.totalorder %s32, 1
        %s184 = scalar_select %p183, %s32, 1
        %p185 = scmp.lt.s32.totalorder %s31, 0
        %s186 = scalar_select %p185, %s31, 0
        %s187 = sadd.s32 %s186, %s184
        %s188 = smul.addr %s187, 8
        %s189 = scalar_lea.vmem %s1, %s188
        %p190 = pneg %p62
        %p191 = pneg %p59
        %p192 = scmp.lt.s32.totalorder %s31, 1
        %s193 = scalar_select %p192, %s31, 1
        %s194 = smul.addr %s193, 8
        %s195 = scalar_lea.vmem %s2, %s194
        %p196 = pneg %p88
        %p197 = pneg %p85
        %p198 = pneg %p109
        %p199 = pneg %p106
        %p200 = pneg %p137
        %p201 = pneg %p134
        %s202 = sand.u32 %s124, 1
        %s203 = scalar_lea.sflag [#allocation7], %s202
        %s204 = sand.u32 %s124, 1
        %s205 = smul.addr %s204, 8
        %s206 = scalar_lea.vmem [#allocation6], %s205
        %p207 = scmp.lt.s32.totalorder %s32, 1
        %s208 = scalar_select %p207, %s32, 1
        %p209 = scmp.lt.s32.totalorder %s31, 0
        %s210 = scalar_select %p209, %s31, 0
        %s211 = sadd.s32 %s210, %s208
        %s212 = smul.addr %s211, 8
        %s213 = scalar_lea.vmem %s1, %s212
        %p214 = scmp.lt.s32.totalorder %s31, 1
        %s215 = scalar_select %p214, %s31, 1
        %s216 = smul.addr %s215, 8
        %s217 = scalar_lea.vmem %s2, %s216
        %s218 = smul.u32 %s31, 8
        loop: start=0, step=1, limit=8
        $region33: #{tpu_custom_call.1} parent=31 // loop_pre_header
          _
        $region34: #{tpu_custom_call.1} parent=31 // loop_header
          %s220 = sphi 0, %s224
          %p221 = scmp.ge.s32.totalorder %s220, 8
        $region35: #{tpu_custom_call.1} parent=31 // loop_header_branch
          %223 = sbr.rel (%p221) target = $region39
        $region36: #{tpu_custom_call.1} parent=31 // loop_body
          %s225 = sadd.s32 %s218, %s220
          %s226 = sshra.s32 %s225, 7
          %s227 = sand.u32 %s225, 127
          %s228 = sadd.s32 %s226, %s32
          %s229 = smul.u32 %s228, 128
          %s230 = sshra.s32 %s225, 7
          %s231 = sand.u32 %s225, 127
          %s232 = sadd.s32 %s229, %s231
          %s233 = sld [smem:[#allocation5 + %s232]]
          %s234 = scalar_lea.hbm %s4, %s233
          %s235 = scalar_lea.vmem [#allocation2], %s220
          // Predicated region
          $region40: #{tpu_custom_call.1} parent=36 // pred_check
            _
          $region41: #{tpu_custom_call.1} parent=36 // pred_check_branch
            %237 = sbr.rel target = $region43
          $region42: #{tpu_custom_call.1} parent=36 // pred_region
            %238 = sst [smem:[#allocation10]] [#allocation9]
            %239 = sst [smem:[#allocation11]] [#allocation8]
          $region43: #{tpu_custom_call.1} parent=36 // pred_fallthru
            _
          %241 = shalt.err (0)
          %s243 = sshll.u32 %s234, 4
          %s244 = int_to_ptr.hbm [resolvable:$true] %s243
          %s245 = sshll.u32 %s235, 4
          %s246 = int_to_ptr.vmem [resolvable:$true] %s245
          %248 = dma.hbm_to_vmem [thread:$0]  %s244, 16, %s246, [#allocation3]
        $region37: #{tpu_custom_call.1} parent=31 // loop_footer
          %s224 = sadd.s32 1, %s220
        $region38: #{tpu_custom_call.1} parent=31 // loop_footer_branch
          %219 = sbr.rel target = $region34
        $region39: #{tpu_custom_call.1} parent=31 // loop_exit
          _
        %v249 = vld [vmem:[%s213] sm:$0xff]
        %v250 = vld [vmem:[%s3] sm:$0x1]
        %v251 = vperm.slane %v250, 0
        %v252 = vld [vmem:[%s3 + $0x1] sm:$0x1]
        %v253 = vperm.slane %v252, 0
        %vm254 = vcmp.eq.s32.totalorder %v249, 1
        %v255 = vsel %vm254, 1, 0
        %256 = vset.pattern.permute.xlu0 0
        %257 = vperm.xlu0 %256, %v255
        %v258 = vpop.permute.xlu0 %257
        %vm259 = vcmp.eq.s32.totalorder %v258, 1
        %v260 = vsel %vm259, %v253, %v251
        %v261 = vld [vmem:[%s217] sm:$0xff]
        %v262 = vadd.f32 %v261, %v260
        loop: start=0, step=1, limit=8
        $region44: #{tpu_custom_call.1} parent=31 // loop_pre_header
          _
        $region45: #{tpu_custom_call.1} parent=31 // loop_header
          %s264 = sphi 0, %s268
          %p265 = scmp.ge.s32.totalorder %s264, 8
        $region46: #{tpu_custom_call.1} parent=31 // loop_header_branch
          %267 = sbr.rel (%p265) target = $region50
        $region47: #{tpu_custom_call.1} parent=31 // loop_body
          %s269 = smul.u32 1, 1
          %s270 = sshll.u32 %s269, 4
          %271 = dma.done [#allocation3], %s270
        $region48: #{tpu_custom_call.1} parent=31 // loop_footer
          %s268 = sadd.s32 1, %s264
        $region49: #{tpu_custom_call.1} parent=31 // loop_footer_branch
          %263 = sbr.rel target = $region45
        $region50: #{tpu_custom_call.1} parent=31 // loop_exit
          _
        %v272 = vld [vmem:[#allocation2] sm:$0xff]
        %v273 = vadd.f32 %v272, %v262
        %274 = vst [vmem:[%s206] sm:$0xff] %v273
        %s275 = sand.u32 %s124, 1
        %s276 = scalar_lea.sflag [#allocation7], %s275
        %s277 = sand.u32 %s124, 1
        %s278 = smul.addr %s277, 8
        %s279 = scalar_lea.vmem [#allocation6], %s278
        // Predicated region
        $region51: #{tpu_custom_call.1} parent=31 // pred_check
          %p280 = pneg %p134
        $region52: #{tpu_custom_call.1} parent=31 // pred_check_branch
          %282 = sbr.rel (%p280) target = $region54
        $region53: #{tpu_custom_call.1} parent=31 // pred_region
          %284 = vsyncadd %s276, 0
          %s285 = sadd.s32 %s31, %s32
          %s286 = smul.addr %s285, 8
          %s287 = scalar_lea.hbm %s5, %s286
          %s289 = sshll.u32 %s279, 4
          %s290 = int_to_ptr.vmem [resolvable:$true] %s289
          %s291 = sshll.u32 %s287, 4
          %s292 = int_to_ptr.hbm [resolvable:$true] %s291
          %294 = dma.vmem_to_hbm [thread:$0]  %s290, 128, %s292, %s276
        $region54: #{tpu_custom_call.1} parent=31 // pred_fallthru
          _
      $region32: #{tpu_custom_call.1} parent=5 // pred_fallthru
        _
      %p295 = scmp.le.s32.totalorder 2, %s22
      // Predicated region
      $region55: #{tpu_custom_call.1} parent=5 // pred_check
        %p296 = pneg %p295
      $region56: #{tpu_custom_call.1} parent=5 // pred_check_branch
        %298 = sbr.rel (%p296) target = $region58
      $region57: #{tpu_custom_call.1} parent=5 // pred_region
        %s299 = ssub.s32 %s22, 2
        // Predicated region
        $region59: #{tpu_custom_call.1} parent=57 // pred_check
          %p300 = pneg %p140
        $region60: #{tpu_custom_call.1} parent=57 // pred_check_branch
          %302 = sbr.rel (%p300) target = $region62
        $region61: #{tpu_custom_call.1} parent=57 // pred_region
          %s303 = sand.u32 %s125, 1
          %s304 = scalar_lea.sflag [#allocation7], %s303
          %s305 = sand.u32 %s125, 1
          %s306 = smul.addr %s305, 8
          %s307 = scalar_lea.vmem [#allocation6], %s306
          %309 = dma.done %s304, 128
        $region62: #{tpu_custom_call.1} parent=57 // pred_fallthru
          _
      $region58: #{tpu_custom_call.1} parent=5 // pred_fallthru
        _
    $region6: #{tpu_custom_call.1} parent=1 // loop_footer
      %s26 = sadd.s32 1, %s22
    $region7: #{tpu_custom_call.1} parent=1 // loop_footer_branch
      %21 = sbr.rel target = $region3
    $region8: #{tpu_custom_call.1} parent=1 // loop_exit
      _
    %310 = vsyncpa [#allocation7], 1
    %s311 = scalar_lea.sflag [#allocation7], 1
    %312 = vsyncpa %s311, 1
  %313 = vsyncmov [#allocation3]
  %s314 = vpop.sfrf %313
  %p315 = scmp.eq.s32.totalorder %s314, 0
  %p316 = pneg %p315
  %318 = shalt.err (%p316)

</llo_original>
